<compile_context>
chip_gen: v5e
topology: v5e:2x2
jax: 0.10.0
libtpu: 0.0.40
codegen_flags: <defaults>
</compile_context>

<pallas_src>
import numpy as np
import jax
import jax.numpy as jnp
from jax.experimental import pallas as pl
from jax.experimental.pallas import tpu as pltpu


def _make_ffm_kernel(F, V, D, TB):
    pairs = [(i, j) for i in range(F - 1) for j in range(i + 1, F)]

    def kernel(x_ref, w_ref, o_ref):
        # x_ref: (TB, F)   int32 — indices with per-field offsets already added
        # w_ref: (V, F*D)  f32   — W2[v, t*D:(t+1)*D] = weights[t][v]
        # o_ref: (TB, P*D) f32   — pairwise cross output (lane-dense)
        w = w_ref[...]                                               # (V, F*D)
        iota_v = jax.lax.broadcasted_iota(jnp.int32, (TB, V), 1)     # (TB, V)

        # embs[f][b, t*D:(t+1)*D] = embeddings[t].weight[x[b, f]] = cross_emb[t][b, f]
        embs = []
        for f in range(F):
            onehot = (iota_v == x_ref[:, f:f + 1]).astype(jnp.float32)   # (TB, V)
            embs.append(jnp.dot(onehot, w,
                                preferred_element_type=jnp.float32))     # (TB, F*D)

        # pair (i, j): cross_emb[i][:, j] * cross_emb[j][:, i]
        #   cross_emb[i][:, j] == embs[j][:, i*D:(i+1)*D]
        #   cross_emb[j][:, i] == embs[i][:, j*D:(j+1)*D]
        for p, (i, j) in enumerate(pairs):
            a = embs[j][:, i * D:(i + 1) * D]
            b = embs[i][:, j * D:(j + 1) * D]
            o_ref[:, p * D:(p + 1) * D] = a * b

    return kernel


def ffm_cross(x, weights, field_dims, *, block_b=256):
    """x: (B, F) int32 raw per-field indices; weights: (F, V, D) f32 stacked tables."""
    B, F = x.shape
    Fw, V, D = weights.shape
    assert Fw == F and V == int(np.sum(field_dims))
    P = F * (F - 1) // 2

    # glue: per-field offsets (same as self.init_index in the PyTorch module)
    offsets = jnp.asarray(
        np.concatenate([[0], np.cumsum(field_dims)[:-1]]).astype(np.int32))
    x_off = (x.astype(jnp.int32) + offsets[None, :]).astype(jnp.int32)

    # Batch tiling: TB multiple of 8 (sublane rule); pad batch to a multiple of TB.
    if B >= block_b:
        TB = block_b
    else:
        TB = int(-(-B // 8) * 8)
    Bp = int(-(-B // TB) * TB)
    if Bp != B:
        x_off = jnp.pad(x_off, ((0, Bp - B), (0, 0)))   # index 0 is a valid row

    # Repack weights into a single lane-dense slab: W2[v, t*D:(t+1)*D] = weights[t][v]
    W2 = jnp.transpose(weights, (1, 0, 2)).reshape(V, F * D)

    kernel = _make_ffm_kernel(F, V, D, TB)
    out2d = pl.pallas_call(
        kernel,
        out_shape=jax.ShapeDtypeStruct((Bp, P * D), jnp.float32),
        grid=(Bp // TB,),
        in_specs=[
            pl.BlockSpec((TB, F), lambda i: (i, 0)),        # batch tile of indices
            pl.BlockSpec((V, F * D), lambda i: (0, 0)),     # full table, resident
        ],
        out_specs=pl.BlockSpec((TB, P * D), lambda i: (i, 0)),
        compiler_params=pltpu.CompilerParams(
            dimension_semantics=("parallel",)),
    )(x_off, W2)

    return out2d[:B].reshape(B, P, D)


def ffm_cross_ref(x, weights, field_dims):
    """Pure-JAX reference mirroring the PyTorch forward."""
    offsets = jnp.asarray(
        np.concatenate([[0], np.cumsum(field_dims)[:-1]]).astype(np.int32))
    xo = x.astype(jnp.int32) + offsets[None, :]
    F = x.shape[1]
    cross_emb = [jnp.take(weights[t], xo, axis=0) for t in range(F)]  # (B, F, D)
    vals = []
    for i in range(F - 1):
        for j in range(i + 1, F):
            vals.append(cross_emb[i][:, j] * cross_emb[j][:, i])
    return jnp.stack(vals, axis=1)


if __name__ == "__main__":
    field_dims = [3, 4, 5, 6]          # F = 4 fields
    emd_dims = 32
    B = 8
    F = len(field_dims)
    V = int(np.sum(field_dims))
    D = emd_dims

    key = jax.random.PRNGKey(0)
    keys = jax.random.split(key, F + 1)

    # deterministic xavier_uniform init for each embedding table (V, D)
    bound = float(np.sqrt(6.0 / (V + D)))
    weights = jnp.stack([
        jax.random.uniform(keys[t], (V, D), jnp.float32, -bound, bound)
        for t in range(F)
    ])                                                    # (F, V, D)

    # deterministic per-field indices in [0, field_dims[f])
    x = jnp.stack([
        jax.random.randint(jax.random.fold_in(keys[F], f), (B,), 0, field_dims[f])
        for f in range(F)
    ], axis=1).astype(jnp.int32)                          # (B, F)

    out = ffm_cross(x, weights, field_dims)
    out = jax.block_until_ready(out)
    ref = ffm_cross_ref(x, weights, field_dims)
    np.testing.assert_allclose(np.asarray(out), np.asarray(ref),
                               rtol=1e-5, atol=1e-5)

    # second check: exercises grid > 1 + batch padding path
    B2 = 40
    x2 = jnp.stack([
        jax.random.randint(jax.random.fold_in(keys[F], 100 + f), (B2,), 0, field_dims[f])
        for f in range(F)
    ], axis=1).astype(jnp.int32)                          # (B2, F)
    out2 = ffm_cross(x2, weights, field_dims, block_b=16)  # TB=16, Bp=48, grid=3
    out2 = jax.block_until_ready(out2)
    ref2 = ffm_cross_ref(x2, weights, field_dims)
    np.testing.assert_allclose(np.asarray(out2), np.asarray(ref2),
                               rtol=1e-5, atol=1e-5)

    print("KERNEL_OK")
</pallas_src>

<mosaic_0001>
module attributes {stable_mosaic.version = 11 : i64} {
  func.func @kernel(%arg0: i32, %arg1: memref<8x4xi32, #tpu.memory_space<vmem>>, %arg2: memref<18x128xf32, #tpu.memory_space<vmem>>, %arg3: memref<8x192xf32, #tpu.memory_space<vmem>>) attributes {dimension_semantics = [#tpu.dimension_semantics<parallel>], iteration_bounds = array<i64: 1>, scalar_prefetch = 0 : i64, scratch_operands = 0 : i64, tpu.core_type = #tpu.core_type<tc>, window_params = [{transform_indices = @transform_0, window_bounds = array<i64: 8, 4>}, {pipeline_mode = #tpu.pipeline_mode<synchronous>, transform_indices = @transform_1, window_bounds = array<i64: 18, 128>}, {transform_indices = @transform_2, window_bounds = array<i64: 8, 192>}]} {
    %c0 = arith.constant 0 : index
    %c0_0 = arith.constant 0 : index
    %0 = vector.load %arg2[%c0, %c0_0] : memref<18x128xf32, #tpu.memory_space<vmem>>, vector<18x128xf32>
    %1 = tpu.iota {dimensions = array<i32: 1>} : vector<8x18xi32>
    %c0_1 = arith.constant 0 : index
    %c0_2 = arith.constant 0 : index
    %2 = vector.load %arg1[%c0_1, %c0_2] : memref<8x4xi32, #tpu.memory_space<vmem>>, vector<8x1xi32>
    %3 = vector.broadcast %2 : vector<8x1xi32> to vector<8x18xi32>
    %4 = arith.cmpi eq, %1, %3 : vector<8x18xi32>
    %5 = arith.extui %4 : vector<8x18xi1> to vector<8x18xi32>
    %6 = arith.sitofp %5 : vector<8x18xi32> to vector<8x18xf32>
    %cst = arith.constant dense<0.000000e+00> : vector<8x128xf32>
    %7 = tpu.matmul %6, %0, %cst {dimension_numbers = #tpu.dot_dimension_numbers<[1], [0], [0], [1], [0, 0, 1, 1], [], []>} : vector<8x18xf32>, vector<18x128xf32>, vector<8x128xf32> -> vector<8x128xf32>
    %c0_3 = arith.constant 0 : index
    %c1 = arith.constant 1 : index
    %8 = vector.load %arg1[%c0_3, %c1] : memref<8x4xi32, #tpu.memory_space<vmem>>, vector<8x1xi32>
    %9 = vector.broadcast %8 : vector<8x1xi32> to vector<8x18xi32>
    %10 = arith.cmpi eq, %1, %9 : vector<8x18xi32>
    %11 = arith.extui %10 : vector<8x18xi1> to vector<8x18xi32>
    %12 = arith.sitofp %11 : vector<8x18xi32> to vector<8x18xf32>
    %cst_4 = arith.constant dense<0.000000e+00> : vector<8x128xf32>
    %13 = tpu.matmul %12, %0, %cst_4 {dimension_numbers = #tpu.dot_dimension_numbers<[1], [0], [0], [1], [0, 0, 1, 1], [], []>} : vector<8x18xf32>, vector<18x128xf32>, vector<8x128xf32> -> vector<8x128xf32>
    %c0_5 = arith.constant 0 : index
    %c2 = arith.constant 2 : index
    %14 = vector.load %arg1[%c0_5, %c2] : memref<8x4xi32, #tpu.memory_space<vmem>>, vector<8x1xi32>
    %15 = vector.broadcast %14 : vector<8x1xi32> to vector<8x18xi32>
    %16 = arith.cmpi eq, %1, %15 : vector<8x18xi32>
    %17 = arith.extui %16 : vector<8x18xi1> to vector<8x18xi32>
    %18 = arith.sitofp %17 : vector<8x18xi32> to vector<8x18xf32>
    %cst_6 = arith.constant dense<0.000000e+00> : vector<8x128xf32>
    %19 = tpu.matmul %18, %0, %cst_6 {dimension_numbers = #tpu.dot_dimension_numbers<[1], [0], [0], [1], [0, 0, 1, 1], [], []>} : vector<8x18xf32>, vector<18x128xf32>, vector<8x128xf32> -> vector<8x128xf32>
    %c0_7 = arith.constant 0 : index
    %c3 = arith.constant 3 : index
    %20 = vector.load %arg1[%c0_7, %c3] : memref<8x4xi32, #tpu.memory_space<vmem>>, vector<8x1xi32>
    %21 = vector.broadcast %20 : vector<8x1xi32> to vector<8x18xi32>
    %22 = arith.cmpi eq, %1, %21 : vector<8x18xi32>
    %23 = arith.extui %22 : vector<8x18xi1> to vector<8x18xi32>
    %24 = arith.sitofp %23 : vector<8x18xi32> to vector<8x18xf32>
    %cst_8 = arith.constant dense<0.000000e+00> : vector<8x128xf32>
    %25 = tpu.matmul %24, %0, %cst_8 {dimension_numbers = #tpu.dot_dimension_numbers<[1], [0], [0], [1], [0, 0, 1, 1], [], []>} : vector<8x18xf32>, vector<18x128xf32>, vector<8x128xf32> -> vector<8x128xf32>
    %26 = vector.extract_strided_slice %13 {offsets = [0, 0], sizes = [8, 32], strides = [1, 1]} : vector<8x128xf32> to vector<8x32xf32>
    %27 = vector.extract_strided_slice %7 {offsets = [0, 32], sizes = [8, 32], strides = [1, 1]} : vector<8x128xf32> to vector<8x32xf32>
    %28 = arith.mulf %26, %27 : vector<8x32xf32>
    %c0_9 = arith.constant 0 : index
    %c0_10 = arith.constant 0 : index
    %29 = vector.load %arg3[%c0_9, %c0_10] : memref<8x192xf32, #tpu.memory_space<vmem>>, vector<8x32xf32>
    tpu.vector_store %arg3[%c0_9, %c0_10], %28 {strides = array<i32>} : memref<8x192xf32, #tpu.memory_space<vmem>>, vector<8x32xf32>,
    %30 = vector.extract_strided_slice %19 {offsets = [0, 0], sizes = [8, 32], strides = [1, 1]} : vector<8x128xf32> to vector<8x32xf32>
    %31 = vector.extract_strided_slice %7 {offsets = [0, 64], sizes = [8, 32], strides = [1, 1]} : vector<8x128xf32> to vector<8x32xf32>
    %32 = arith.mulf %30, %31 : vector<8x32xf32>
    %c0_11 = arith.constant 0 : index
    %c32 = arith.constant 32 : index
    %33 = vector.load %arg3[%c0_11, %c32] : memref<8x192xf32, #tpu.memory_space<vmem>>, vector<8x32xf32>
    tpu.vector_store %arg3[%c0_11, %c32], %32 {strides = array<i32>} : memref<8x192xf32, #tpu.memory_space<vmem>>, vector<8x32xf32>,
    %34 = vector.extract_strided_slice %25 {offsets = [0, 0], sizes = [8, 32], strides = [1, 1]} : vector<8x128xf32> to vector<8x32xf32>
    %35 = vector.extract_strided_slice %7 {offsets = [0, 96], sizes = [8, 32], strides = [1, 1]} : vector<8x128xf32> to vector<8x32xf32>
    %36 = arith.mulf %34, %35 : vector<8x32xf32>
    %c0_12 = arith.constant 0 : index
    %c64 = arith.constant 64 : index
    %37 = vector.load %arg3[%c0_12, %c64] : memref<8x192xf32, #tpu.memory_space<vmem>>, vector<8x32xf32>
    tpu.vector_store %arg3[%c0_12, %c64], %36 {strides = array<i32>} : memref<8x192xf32, #tpu.memory_space<vmem>>, vector<8x32xf32>,
    %38 = vector.extract_strided_slice %19 {offsets = [0, 32], sizes = [8, 32], strides = [1, 1]} : vector<8x128xf32> to vector<8x32xf32>
    %39 = vector.extract_strided_slice %13 {offsets = [0, 64], sizes = [8, 32], strides = [1, 1]} : vector<8x128xf32> to vector<8x32xf32>
    %40 = arith.mulf %38, %39 : vector<8x32xf32>
    %c0_13 = arith.constant 0 : index
    %c96 = arith.constant 96 : index
    %41 = vector.load %arg3[%c0_13, %c96] : memref<8x192xf32, #tpu.memory_space<vmem>>, vector<8x32xf32>
    tpu.vector_store %arg3[%c0_13, %c96], %40 {strides = array<i32>} : memref<8x192xf32, #tpu.memory_space<vmem>>, vector<8x32xf32>,
    %42 = vector.extract_strided_slice %25 {offsets = [0, 32], sizes = [8, 32], strides = [1, 1]} : vector<8x128xf32> to vector<8x32xf32>
    %43 = vector.extract_strided_slice %13 {offsets = [0, 96], sizes = [8, 32], strides = [1, 1]} : vector<8x128xf32> to vector<8x32xf32>
    %44 = arith.mulf %42, %43 : vector<8x32xf32>
    %c0_14 = arith.constant 0 : index
    %c128 = arith.constant 128 : index
    %45 = vector.load %arg3[%c0_14, %c128] : memref<8x192xf32, #tpu.memory_space<vmem>>, vector<8x32xf32>
    tpu.vector_store %arg3[%c0_14, %c128], %44 {strides = array<i32>} : memref<8x192xf32, #tpu.memory_space<vmem>>, vector<8x32xf32>,
    %46 = vector.extract_strided_slice %25 {offsets = [0, 64], sizes = [8, 32], strides = [1, 1]} : vector<8x128xf32> to vector<8x32xf32>
    %47 = vector.extract_strided_slice %19 {offsets = [0, 96], sizes = [8, 32], strides = [1, 1]} : vector<8x128xf32> to vector<8x32xf32>
    %48 = arith.mulf %46, %47 : vector<8x32xf32>
    %c0_15 = arith.constant 0 : index
    %c160 = arith.constant 160 : index
    %49 = vector.load %arg3[%c0_15, %c160] : memref<8x192xf32, #tpu.memory_space<vmem>>, vector<8x32xf32>
    tpu.vector_store %arg3[%c0_15, %c160], %48 {strides = array<i32>} : memref<8x192xf32, #tpu.memory_space<vmem>>, vector<8x32xf32>,
    return
  }
  func.func @transform_0(%arg0: i32) -> (i32, i32) {
    %c0_i32 = arith.constant 0 : i32
    %c0_i32_0 = arith.constant 0 : i32
    return %arg0, %c0_i32 : i32, i32
  }
  func.func @transform_1(%arg0: i32) -> (i32, i32) {
    %c0_i32 = arith.constant 0 : i32
    %c0_i32_0 = arith.constant 0 : i32
    %c0_i32_1 = arith.constant 0 : i32
    return %c0_i32, %c0_i32_0 : i32, i32
  }
  func.func @transform_2(%arg0: i32) -> (i32, i32) {
    %c0_i32 = arith.constant 0 : i32
    %c0_i32_0 = arith.constant 0 : i32
    return %arg0, %c0_i32 : i32, i32
  }
}

</mosaic_0001>

<llo_original>
// kernel: tpu_custom_call.1
$region0: #{tpu_custom_call.1}
  #allocation0 [shape = 'u32[]', space=smem, size = 0x4, offset = 0x4, fixed_abs, tag = 'smem constant byte address 0x4 - core index']
  #allocation1 [shape = 'u32[72,128]{1,0:T(1,128)}', space=vmem, size = 0x9000, scoped, tag = 'internal scratch']
  %s0 = inlined_call_operand.vmem [shape: s32[8,4], index: 0, kind: input, shape index: {}]
  %s1 = inlined_call_operand.hbm [shape: f32[18,128], index: 1, kind: input, shape index: {}]
  %s2 = inlined_call_operand.hbm [shape: f32[8,192], index: 2, kind: output, shape index: {}]
  %s3 = sld [smem:[#allocation0]]
  $region22: #{tpu_custom_call.1} parent=0
    _
  %s5 = ssub.s32 1, %s3
  %s6 = scalar_select 0, %s5, %s3
  $region1: #{tpu_custom_call.1} parent=0
    #allocation2 [shape = 'u8[12288]{0}', space=vmem, size = 0x3000, scoped, tag = 'input window, operand 1, single buffered']
    #allocation3 [shape = 's32[1]{0}', space=sflag, size = 0x4, scoped, tag = 'scoped memory for tpu_custom_call.1']
    #allocation4 [shape = 's32[1]{0}', space=sflag, size = 0x4, scoped, tag = 'scoped memory for tpu_custom_call.1']
    #allocation5 [shape = 'u8[8192]{0}', space=vmem, size = 0x2000, scoped, tag = 'output window, operand 0, single buffered']
    %7 = vsyncpa [#allocation3], 0
    %8 = vsyncpa [#allocation4], 0
    // Predicated region
    $region2: #{tpu_custom_call.1} parent=1 // pred_check
      _
    $region3: #{tpu_custom_call.1} parent=1 // pred_check_branch
      %10 = sbr.rel (0) target = $region5
    $region4: #{tpu_custom_call.1} parent=1 // pred_region
      _
    $region5: #{tpu_custom_call.1} parent=1 // pred_fallthru
      _
    // Predicated region
    $region6: #{tpu_custom_call.1} parent=1 // pred_check
      _
    $region7: #{tpu_custom_call.1} parent=1 // pred_check_branch
      %12 = sbr.rel (0) target = $region9
    $region8: #{tpu_custom_call.1} parent=1 // pred_region
      %14 = vsyncadd [#allocation3], 0
      %s15 = sshll.u32 %s1, 4
      %s16 = int_to_ptr.hbm [resolvable:$true] %s15
      %s17 = sshll.u32 [#allocation2], 4
      %s18 = int_to_ptr.vmem [resolvable:$true] %s17
      %23 = dma.hbm_to_vmem [thread:$0]  %s16, 384, %s18, [#allocation3], 128, 128, 8
    $region9: #{tpu_custom_call.1} parent=1 // pred_fallthru
      _
    // Predicated region
    $region10: #{tpu_custom_call.1} parent=1 // pred_check
      _
    $region11: #{tpu_custom_call.1} parent=1 // pred_check_branch
      %25 = sbr.rel (0) target = $region13
    $region12: #{tpu_custom_call.1} parent=1 // pred_region
      %27 = dma.done [#allocation3], 384
    $region13: #{tpu_custom_call.1} parent=1 // pred_fallthru
      _
    %v28 = vld [vmem:[#allocation2] sm:$0xff]
    %v29 = vld [vmem:[#allocation2 + $0x8] sm:$0xff]
    %v30 = vld [vmem:[#allocation2 + $0x10] sm:$0x3]
    %v31 = vlaneseq
    %v32 = vand.u32 %v31, 127
    %v33 = vld [vmem:[%s0] sm:$0xff]
    %34 = vset.pattern.permute.xlu0 0
    %35 = vperm.xlu0 %34, %v33
    %v36 = vpop.permute.xlu0 %35
    %vm37 = vcmp.eq.s32.totalorder %v32, %v36
    %v38 = vsel %vm37, 1, 0
    %v39 = vcvt.s32.f32 %v38
    %vm40 = vcmask 146432
    %v42 = vsel %vm40, %v39, 0
    %vm44 = vcmask 1041408
    %v46 = vsel %vm44, %v30, 0
    %48 = vmatpush.msra.mxu0 0.0
    %49 = vmatpush.msra.mxu0 0.0
    %50 = vmatpush.msra.mxu0 0.0
    %51 = vmatpush.msra.mxu0 0.0
    %52 = vmatpush.msra.mxu0 0.0
    %53 = vmatpush.msra.mxu0 0.0
    %54 = vmatpush.msra.mxu0 0.0
    %55 = vmatpush.msra.mxu0 0.0
    %56 = vmatpush.msra.mxu0 0.0
    %57 = vmatpush.msra.mxu0 0.0
    %58 = vmatpush.msra.mxu0 0.0
    %59 = vmatpush.msra.mxu0 0.0
    %60 = vmatpush.msra.mxu0 0.0
    %61 = vmatpush.msra.mxu0 %v46
    %62 = vmatpush.msra.mxu0 %v29
    %63 = vmatpush.msra.mxu0 %v28
    %64 = vmatmul.f32.gmra.mxu0 %v42
    %v65 = vpop.f32.mrf.mxu0
    %v66 = vadd.f32 0.0, %v65
    %67 = vdwg.mxu0
    %68 = vset.pattern.permute.xlu0 1
    %69 = vperm.xlu0 %68, %v33
    %v70 = vpop.permute.xlu0 %69
    %vm71 = vcmp.eq.s32.totalorder %v32, %v70
    %v72 = vsel %vm71, 1, 0
    %v73 = vcvt.s32.f32 %v72
    %v75 = vsel %vm40, %v73, 0
    %77 = vmatpush.msra.mxu0 0.0
    %78 = vmatpush.msra.mxu0 0.0
    %79 = vmatpush.msra.mxu0 0.0
    %80 = vmatpush.msra.mxu0 0.0
    %81 = vmatpush.msra.mxu0 0.0
    %82 = vmatpush.msra.mxu0 0.0
    %83 = vmatpush.msra.mxu0 0.0
    %84 = vmatpush.msra.mxu0 0.0
    %85 = vmatpush.msra.mxu0 0.0
    %86 = vmatpush.msra.mxu0 0.0
    %87 = vmatpush.msra.mxu0 0.0
    %88 = vmatpush.msra.mxu0 0.0
    %89 = vmatpush.msra.mxu0 0.0
    %90 = vmatpush.msra.mxu0 %v46
    %91 = vmatpush.msra.mxu0 %v29
    %92 = vmatpush.msra.mxu0 %v28
    %93 = vmatmul.f32.gmra.mxu0 %v75
    %v94 = vpop.f32.mrf.mxu0
    %v95 = vadd.f32 0.0, %v94
    %96 = vdwg.mxu0
    %97 = vset.pattern.permute.xlu0 2
    %98 = vperm.xlu0 %97, %v33
    %v99 = vpop.permute.xlu0 %98
    %vm100 = vcmp.eq.s32.totalorder %v32, %v99
    %v101 = vsel %vm100, 1, 0
    %v102 = vcvt.s32.f32 %v101
    %v104 = vsel %vm40, %v102, 0
    %106 = vmatpush.msra.mxu0 0.0
    %107 = vmatpush.msra.mxu0 0.0
    %108 = vmatpush.msra.mxu0 0.0
    %109 = vmatpush.msra.mxu0 0.0
    %110 = vmatpush.msra.mxu0 0.0
    %111 = vmatpush.msra.mxu0 0.0
    %112 = vmatpush.msra.mxu0 0.0
    %113 = vmatpush.msra.mxu0 0.0
    %114 = vmatpush.msra.mxu0 0.0
    %115 = vmatpush.msra.mxu0 0.0
    %116 = vmatpush.msra.mxu0 0.0
    %117 = vmatpush.msra.mxu0 0.0
    %118 = vmatpush.msra.mxu0 0.0
    %119 = vmatpush.msra.mxu0 %v46
    %120 = vmatpush.msra.mxu0 %v29
    %121 = vmatpush.msra.mxu0 %v28
    %122 = vmatmul.f32.gmra.mxu0 %v104
    %v123 = vpop.f32.mrf.mxu0
    %v124 = vadd.f32 0.0, %v123
    %125 = vdwg.mxu0
    %126 = vset.pattern.permute.xlu0 3
    %127 = vperm.xlu0 %126, %v33
    %v128 = vpop.permute.xlu0 %127
    %vm129 = vcmp.eq.s32.totalorder %v32, %v128
    %v130 = vsel %vm129, 1, 0
    %v131 = vcvt.s32.f32 %v130
    %v133 = vsel %vm40, %v131, 0
    %135 = vmatpush.msra.mxu0 0.0
    %136 = vmatpush.msra.mxu0 0.0
    %137 = vmatpush.msra.mxu0 0.0
    %138 = vmatpush.msra.mxu0 0.0
    %139 = vmatpush.msra.mxu0 0.0
    %140 = vmatpush.msra.mxu0 0.0
    %141 = vmatpush.msra.mxu0 0.0
    %142 = vmatpush.msra.mxu0 0.0
    %143 = vmatpush.msra.mxu0 0.0
    %144 = vmatpush.msra.mxu0 0.0
    %145 = vmatpush.msra.mxu0 0.0
    %146 = vmatpush.msra.mxu0 0.0
    %147 = vmatpush.msra.mxu0 0.0
    %148 = vmatpush.msra.mxu0 %v46
    %149 = vmatpush.msra.mxu0 %v29
    %150 = vmatpush.msra.mxu0 %v28
    %151 = vmatmul.f32.gmra.mxu0 %v133
    %v152 = vpop.f32.mrf.mxu0
    %v153 = vadd.f32 0.0, %v152
    %154 = vdwg.mxu0
    %156 = vrot.lane.b32.xlu0 %v66, 96
    %v157 = vpop.permute.xlu0 %156
    %v159 = vmul.f32 %v95, %v157
    %vm160 = vcmask 261120
    %161 = vst.msk [vmem:[#allocation5] sm:$0xff] %vm160, %v159
    %162 = vrot.lane.b32.xlu0 %v66, 64
    %v163 = vpop.permute.xlu0 %162
    %v165 = vmul.f32 %v124, %v163
    %167 = vrot.lane.b32.xlu0 %v165, 32
    %v168 = vpop.permute.xlu0 %167
    %vm170 = vcmask 523520
    %171 = vst.msk [vmem:[#allocation5] sm:$0xff] %vm170, %v168
    %172 = vrot.lane.b32.xlu0 %v66, 32
    %v173 = vpop.permute.xlu0 %172
    %v175 = vmul.f32 %v153, %v173
    %177 = vrot.lane.b32.xlu0 %v175, 64
    %v178 = vpop.permute.xlu0 %177
    %vm180 = vcmask 785920
    %181 = vst.msk [vmem:[#allocation5] sm:$0xff] %vm180, %v178
    %183 = vrot.lane.b32.xlu0 %v95, 96
    %v184 = vpop.permute.xlu0 %183
    %v186 = vmul.f32 %v124, %v184
    %188 = vrot.lane.b32.xlu0 %v186, 64
    %v189 = vpop.permute.xlu0 %188
    %vm191 = vcmask 1048320
    %192 = vst.msk [vmem:[#allocation5] sm:$0xff] %vm191, %v189
    %193 = vrot.lane.b32.xlu0 %v95, 64
    %v194 = vpop.permute.xlu0 %193
    %v196 = vmul.f32 %v153, %v194
    %198 = vrot.lane.b32.xlu0 %v196, 96
    %v199 = vpop.permute.xlu0 %198
    %201 = vst.msk [vmem:[#allocation5 + $0x8] sm:$0xff] %vm160, %v199
    %203 = vrot.lane.b32.xlu0 %v124, 96
    %v204 = vpop.permute.xlu0 %203
    %v206 = vmul.f32 %v153, %v204
    %208 = vrot.lane.b32.xlu0 %v206, 96
    %v209 = vpop.permute.xlu0 %208
    %211 = vst.msk [vmem:[#allocation5 + $0x8] sm:$0xff] %vm170, %v209
    // Predicated region
    $region14: #{tpu_custom_call.1} parent=1 // pred_check
      _
    $region15: #{tpu_custom_call.1} parent=1 // pred_check_branch
      %213 = sbr.rel (0) target = $region17
    $region16: #{tpu_custom_call.1} parent=1 // pred_region
      %215 = vsyncadd [#allocation4], 0
      %s217 = sshll.u32 [#allocation5], 4
      %s218 = int_to_ptr.vmem [resolvable:$true] %s217
      %s219 = sshll.u32 %s2, 4
      %s220 = int_to_ptr.hbm [resolvable:$true] %s219
      %222 = dma.vmem_to_hbm [thread:$0]  %s218, 256, %s220, [#allocation4]
    $region17: #{tpu_custom_call.1} parent=1 // pred_fallthru
      _
    // Predicated region
    $region18: #{tpu_custom_call.1} parent=1 // pred_check
      _
    $region19: #{tpu_custom_call.1} parent=1 // pred_check_branch
      %224 = sbr.rel (0) target = $region21
    $region20: #{tpu_custom_call.1} parent=1 // pred_region
      %226 = dma.done [#allocation4], 256
    $region21: #{tpu_custom_call.1} parent=1 // pred_fallthru
      _
    %227 = vsyncpa [#allocation3], 1
    %228 = vsyncpa [#allocation4], 1

</llo_original>
